<compile_context>
chip_gen: v6e
topology: v6e:2x2x1
jax: 0.10.0
libtpu: 0.0.40
codegen_flags: <defaults>
</compile_context>

<pallas_src>
import math

import jax
import jax.numpy as jnp
from jax.experimental import pallas as pl
from jax.experimental.pallas import tpu as pltpu


def _ffn_kernel(x_ref, w1_ref, b1_ref, w2_ref, b2_ref, o_ref, acc_ref):
    # x_ref:  (TM, d_model)    w1_ref: (d_model, TK)   b1_ref: (1, TK)
    # w2_ref: (TK, d_model)    b2_ref: (1, d_model)    o_ref:  (TM, d_model)
    # acc_ref: (TM, d_model) f32 scratch, resident across the d_ff reduction axis.
    k = pl.program_id(1)

    @pl.when(k == 0)
    def _init():
        # Fold b2 into the accumulator init: finalize becomes a pure cast/store.
        acc_ref[...] = jnp.broadcast_to(
            b2_ref[...].astype(jnp.float32), acc_ref.shape)

    # First matmul (MXU, f32 accumulation) + per-chunk bias + ReLU (VPU).
    h = jnp.dot(x_ref[...], w1_ref[...], preferred_element_type=jnp.float32)
    h = jnp.maximum(h + b1_ref[...], 0.0)
    # Feed the second matmul in the weight dtype (bf16 MXU fast path on v6e/v7x).
    h = h.astype(w2_ref.dtype)

    acc_ref[...] += jnp.dot(h, w2_ref[...], preferred_element_type=jnp.float32)

    @pl.when(k == pl.num_programs(1) - 1)
    def _finalize():
        o_ref[...] = acc_ref[...].astype(o_ref.dtype)


def _cdiv(a, b):
    return (a + b - 1) // b


def _round_up(a, m):
    return _cdiv(a, m) * m


def _estimate_vmem(tm, tk, d_model, x_bytes, o_bytes, w_bytes, wbuf=2):
    """VMEM working-set estimate for one (TM, TK) tile choice, +25% headroom
    for Mosaic internal scratch / MXU result staging / DMA descriptors."""
    est = (
        2 * tm * d_model * x_bytes          # x tile (double-buffered)
        + 2 * tm * d_model * o_bytes        # out tile (double-buffered)
        + wbuf * d_model * tk * w_bytes     # w1 chunk buffers
        + wbuf * tk * w_bytes               # b1 chunk buffers
        + wbuf * tk * d_model * w_bytes     # w2 chunk buffers
        + wbuf * d_model * w_bytes          # b2 buffers
        + tm * d_model * 4                  # f32 accumulator scratch
        + tm * tk * (4 + w_bytes)           # f32 hidden tile + cast copy
    )
    return int(est) * 5 // 4


def feed_forward(x, w1, b1, w2, b2, *, target_tk=1024):
    """x: (B, S, d_model); w1: (d_model, d_ff); b1: (d_ff,);
       w2: (d_ff, d_model); b2: (d_model,). Returns (B, S, d_model)."""
    B, S, d_model = x.shape
    d_ff = w1.shape[1]
    M = B * S

    # Cast activations to the weight dtype host-side: halves x DMA with bf16
    # weights and avoids the slow f32-promoted first matmul on v6e/v7x.
    compute_dtype = w1.dtype
    out_dtype = x.dtype
    x_bytes = jnp.dtype(compute_dtype).itemsize
    o_bytes = jnp.dtype(out_dtype).itemsize
    w_bytes = jnp.dtype(w1.dtype).itemsize

    # Generation-aware VMEM budget (no flat 64 MiB cap).
    try:
        vmem_cap = int(pltpu.get_tpu_info().vmem_capacity_bytes)
    except Exception:  # conservative fallback if the query is unavailable
        vmem_cap = 64 << 20
    budget = vmem_cap * 4 // 5          # ~102 MiB v5e/v6e, ~51 MiB v7x (headroom)
    small_vmem = vmem_cap <= (80 << 20)  # v7x class: 64 MiB per TensorCore
    target_tm = 512 if small_vmem else 1024

    # --- TM (token tile): the main lever — weights are re-streamed once per
    # token tile, so bigger TM => proportionally less HBM weight traffic. ---
    tk_probe = min(d_ff, 256)
    if M <= 256:
        TM = _round_up(M, 8)            # single sublane-aligned token tile
    else:
        TM = min(_round_up(target_tm, 128), _round_up(M, 128))
        while TM > 128 and _estimate_vmem(TM, tk_probe, d_model,
                                          x_bytes, o_bytes, w_bytes) > budget:
            TM -= 128
        # v7x: keep >= 2 token tiles so both TensorCores get work on the
        # "parallel" axis.
        if small_vmem and _cdiv(M, TM) < 2:
            TM = max(128, _round_up(_cdiv(M, 2), 128))

    # --- TK (d_ff chunk): weights-resident fast path when they fit. ---
    resident_bytes = 2 * (2 * d_model * d_ff + d_ff + d_model) * w_bytes
    if (resident_bytes <= budget // 2
            and _estimate_vmem(TM, d_ff, d_model,
                               x_bytes, o_bytes, w_bytes) <= budget):
        TK = d_ff                        # reduction axis collapses to 1 step;
    else:                                # w1/w2 DMA'd exactly once for all of M
        TK = None
        for mult in (256, 128):
            t = (min(target_tk, d_ff) // mult) * mult
            while t >= mult:
                if d_ff % t == 0 and _estimate_vmem(
                        TM, t, d_model, x_bytes, o_bytes, w_bytes) <= budget:
                    TK = t
                    break
                t -= mult
            if TK is not None:
                break
        if TK is None:
            TK = 128 if d_ff % 128 == 0 else d_ff

    grid_m = _cdiv(M, TM)
    grid_k = d_ff // TK
    Mp = grid_m * TM

    x2d = x.reshape(M, d_model).astype(compute_dtype)
    if Mp != M:  # robust to non-divisible M: pad tokens, slice result
        x2d = jnp.pad(x2d, ((0, Mp - M), (0, 0)))
    b1_2d = b1.reshape(1, d_ff)
    b2_2d = b2.reshape(1, d_model)

    # Deeper buffering on the per-k weight-chunk DMAs (the only per-step
    # transfers) when the reduction axis is long and VMEM allows it.
    use_deep_buf = (grid_k >= 3 and _estimate_vmem(
        TM, TK, d_model, x_bytes, o_bytes, w_bytes, wbuf=3) <= budget)
    if use_deep_buf:
        w1_spec = pl.BlockSpec((d_model, TK), lambda i, k: (0, k),
                               pipeline_mode=pl.Buffered(3))
        w2_spec = pl.BlockSpec((TK, d_model), lambda i, k: (k, 0),
                               pipeline_mode=pl.Buffered(3))
    else:
        w1_spec = pl.BlockSpec((d_model, TK), lambda i, k: (0, k))
        w2_spec = pl.BlockSpec((TK, d_model), lambda i, k: (k, 0))

    est = _estimate_vmem(TM, TK, d_model, x_bytes, o_bytes, w_bytes,
                         wbuf=3 if use_deep_buf else 2)
    vmem_limit = int(min(max(est, budget), vmem_cap * 9 // 10))

    out2d = pl.pallas_call(
        _ffn_kernel,
        out_shape=jax.ShapeDtypeStruct((Mp, d_model), out_dtype),
        grid_spec=pltpu.PrefetchScalarGridSpec(
            num_scalar_prefetch=0,
            grid=(grid_m, grid_k),
            in_specs=[
                pl.BlockSpec((TM, d_model), lambda i, k: (i, 0)),   # x tile
                w1_spec,                                            # w1 chunk
                pl.BlockSpec((1, TK), lambda i, k: (0, k)),         # b1 chunk
                w2_spec,                                            # w2 chunk
                pl.BlockSpec((1, d_model), lambda i, k: (0, 0)),    # b2 (resident)
            ],
            out_specs=pl.BlockSpec((TM, d_model), lambda i, k: (i, 0)),
            scratch_shapes=[pltpu.VMEM((TM, d_model), jnp.float32)],
        ),
        compiler_params=pltpu.CompilerParams(
            dimension_semantics=("parallel", "arbitrary"),
            vmem_limit_bytes=vmem_limit,
        ),
    )(x2d, w1, b1_2d, w2, b2_2d)

    if Mp != M:
        out2d = out2d[:M]
    return out2d.reshape(B, S, d_model)


def init_params(key, d_model, d_ff, dtype=jnp.float32):
    """Deterministic init mimicking nn.Linear's uniform(-1/sqrt(fan_in), 1/sqrt(fan_in))."""
    k1, k2, k3, k4 = jax.random.split(key, 4)
    bound1 = 1.0 / math.sqrt(d_model)
    bound2 = 1.0 / math.sqrt(d_ff)
    # Stored pre-transposed: (in_features, out_features).
    w1 = jax.random.uniform(k1, (d_model, d_ff), dtype, -bound1, bound1)
    b1 = jax.random.uniform(k2, (d_ff,), dtype, -bound1, bound1)
    w2 = jax.random.uniform(k3, (d_ff, d_model), dtype, -bound2, bound2)
    b2 = jax.random.uniform(k4, (d_model,), dtype, -bound2, bound2)
    return w1, b1, w2, b2


if __name__ == "__main__":
    key = jax.random.PRNGKey(0)
    kx, kp = jax.random.split(key)

    B, S, d_model, d_ff = 2, 8, 32, 64
    x = jax.random.normal(kx, (B, S, d_model), jnp.float32)
    w1, b1, w2, b2 = init_params(kp, d_model, d_ff, dtype=jnp.float32)

    # f32 path: tight tolerance vs pure-JAX reference (dropout = identity in eval).
    out = jax.block_until_ready(feed_forward(x, w1, b1, w2, b2))
    ref = jnp.maximum(x @ w1 + b1, 0.0) @ w2 + b2
    assert out.shape == (B, S, d_model)
    assert jnp.allclose(out, ref, atol=1e-5, rtol=1e-5), "f32 mismatch vs reference"

    # bf16 params + activations (the recommended configuration on v6e/v7x):
    # MXU still accumulates in f32 inside the kernel, only storage precision drops.
    xb = x.astype(jnp.bfloat16)
    w1b, b1b, w2b, b2b = (t.astype(jnp.bfloat16) for t in (w1, b1, w2, b2))
    out_bf16 = jax.block_until_ready(feed_forward(xb, w1b, b1b, w2b, b2b))
    assert out_bf16.shape == (B, S, d_model)
    assert jnp.allclose(out_bf16.astype(jnp.float32), ref, atol=5e-2, rtol=5e-2), \
        "bf16 mismatch vs reference"

    # f32 activations with bf16 weights: wrapper casts x to bf16, so both MXU
    # passes still run at the bf16 rate (perf-review item).
    out_mixed = jax.block_until_ready(feed_forward(x, w1b, b1b, w2b, b2b))
    assert jnp.allclose(out_mixed, ref, atol=5e-2, rtol=5e-2), \
        "mixed-precision mismatch vs reference"

    # Non-divisible token count exercises the padded-M path.
    x_odd = jax.random.normal(kx, (3, 7, d_model), jnp.float32)
    out_odd = jax.block_until_ready(feed_forward(x_odd, w1, b1, w2, b2))
    ref_odd = jnp.maximum(x_odd @ w1 + b1, 0.0) @ w2 + b2
    assert jnp.allclose(out_odd, ref_odd, atol=1e-5, rtol=1e-5), \
        "padded-M mismatch vs reference"

    print("KERNEL_OK")
</pallas_src>

<mosaic_0001>
module attributes {stable_mosaic.version = 11 : i64} {
  func.func @_ffn_kernel(%arg0: i32, %arg1: i32, %arg2: memref<16x32xf32, #tpu.memory_space<vmem>>, %arg3: memref<32x64xf32, #tpu.memory_space<vmem>>, %arg4: memref<1x64xf32, #tpu.memory_space<vmem>>, %arg5: memref<64x32xf32, #tpu.memory_space<vmem>>, %arg6: memref<1x32xf32, #tpu.memory_space<vmem>>, %arg7: memref<16x32xf32, #tpu.memory_space<vmem>>, %arg8: memref<16x32xf32, #tpu.memory_space<vmem>>) attributes {dimension_semantics = [#tpu.dimension_semantics<parallel>, #tpu.dimension_semantics<arbitrary>], iteration_bounds = array<i64: 1, 1>, scalar_prefetch = 0 : i64, scratch_operands = 1 : i64, tpu.core_type = #tpu.core_type<tc>, window_params = [{transform_indices = @transform_0, window_bounds = array<i64: 16, 32>}, {transform_indices = @transform_1, window_bounds = array<i64: 32, 64>}, {transform_indices = @transform_2, window_bounds = array<i64: 1, 64>}, {transform_indices = @transform_3, window_bounds = array<i64: 64, 32>}, {pipeline_mode = #tpu.pipeline_mode<synchronous>, transform_indices = @transform_4, window_bounds = array<i64: 1, 32>}, {transform_indices = @transform_5, window_bounds = array<i64: 16, 32>}]} {
    %c0_i32 = arith.constant 0 : i32
    %0 = arith.cmpi eq, %arg1, %c0_i32 : i32
    %1 = arith.extui %0 : i1 to i32
    %c0_i32_0 = arith.constant 0 : i32
    %2 = arith.cmpi ne, %1, %c0_i32_0 : i32
    scf.if %2 {
      %c0_16 = arith.constant 0 : index
      %c0_17 = arith.constant 0 : index
      %19 = vector.load %arg6[%c0_16, %c0_17] : memref<1x32xf32, #tpu.memory_space<vmem>>, vector<1x32xf32>
      %20 = vector.shape_cast %19 : vector<1x32xf32> to vector<1x32xf32>
      %21 = vector.broadcast %20 : vector<1x32xf32> to vector<16x32xf32>
      %c0_18 = arith.constant 0 : index
      %c0_19 = arith.constant 0 : index
      %22 = vector.load %arg8[%c0_18, %c0_19] : memref<16x32xf32, #tpu.memory_space<vmem>>, vector<16x32xf32>
      tpu.vector_store %arg8[%c0_18, %c0_19], %21 {strides = array<i32>} : memref<16x32xf32, #tpu.memory_space<vmem>>, vector<16x32xf32>,
    } else {
    }
    %c0 = arith.constant 0 : index
    %c0_1 = arith.constant 0 : index
    %3 = vector.load %arg2[%c0, %c0_1] : memref<16x32xf32, #tpu.memory_space<vmem>>, vector<16x32xf32>
    %c0_2 = arith.constant 0 : index
    %c0_3 = arith.constant 0 : index
    %4 = vector.load %arg3[%c0_2, %c0_3] : memref<32x64xf32, #tpu.memory_space<vmem>>, vector<32x64xf32>
    %cst = arith.constant dense<0.000000e+00> : vector<16x64xf32>
    %5 = tpu.matmul %3, %4, %cst {dimension_numbers = #tpu.dot_dimension_numbers<[1], [0], [0], [1], [0, 0, 1, 1], [], []>} : vector<16x32xf32>, vector<32x64xf32>, vector<16x64xf32> -> vector<16x64xf32>
    %c0_4 = arith.constant 0 : index
    %c0_5 = arith.constant 0 : index
    %6 = vector.load %arg4[%c0_4, %c0_5] : memref<1x64xf32, #tpu.memory_space<vmem>>, vector<1x64xf32>
    %7 = vector.broadcast %6 : vector<1x64xf32> to vector<16x64xf32>
    %8 = arith.addf %5, %7 : vector<16x64xf32>
    %cst_6 = arith.constant 0.000000e+00 : f32
    %9 = vector.broadcast %cst_6 : f32 to vector<16x64xf32>
    %10 = arith.maximumf %8, %9 : vector<16x64xf32>
    %c0_7 = arith.constant 0 : index
    %c0_8 = arith.constant 0 : index
    %11 = vector.load %arg8[%c0_7, %c0_8] : memref<16x32xf32, #tpu.memory_space<vmem>>, vector<16x32xf32>
    %c0_9 = arith.constant 0 : index
    %c0_10 = arith.constant 0 : index
    %12 = vector.load %arg5[%c0_9, %c0_10] : memref<64x32xf32, #tpu.memory_space<vmem>>, vector<64x32xf32>
    %cst_11 = arith.constant dense<0.000000e+00> : vector<16x32xf32>
    %13 = tpu.matmul %10, %12, %cst_11 {dimension_numbers = #tpu.dot_dimension_numbers<[1], [0], [0], [1], [0, 0, 1, 1], [], []>} : vector<16x64xf32>, vector<64x32xf32>, vector<16x32xf32> -> vector<16x32xf32>
    %14 = arith.addf %11, %13 : vector<16x32xf32>
    %c0_12 = arith.constant 0 : index
    %c0_13 = arith.constant 0 : index
    %15 = vector.load %arg8[%c0_12, %c0_13] : memref<16x32xf32, #tpu.memory_space<vmem>>, vector<16x32xf32>
    tpu.vector_store %arg8[%c0_12, %c0_13], %14 {strides = array<i32>} : memref<16x32xf32, #tpu.memory_space<vmem>>, vector<16x32xf32>,
    %c0_i32_14 = arith.constant 0 : i32
    %16 = arith.cmpi eq, %arg1, %c0_i32_14 : i32
    %17 = arith.extui %16 : i1 to i32
    %c0_i32_15 = arith.constant 0 : i32
    %18 = arith.cmpi ne, %17, %c0_i32_15 : i32
    scf.if %18 {
      %c0_16 = arith.constant 0 : index
      %c0_17 = arith.constant 0 : index
      %19 = vector.load %arg8[%c0_16, %c0_17] : memref<16x32xf32, #tpu.memory_space<vmem>>, vector<16x32xf32>
      %c0_18 = arith.constant 0 : index
      %c0_19 = arith.constant 0 : index
      %20 = vector.load %arg7[%c0_18, %c0_19] : memref<16x32xf32, #tpu.memory_space<vmem>>, vector<16x32xf32>
      tpu.vector_store %arg7[%c0_18, %c0_19], %19 {strides = array<i32>} : memref<16x32xf32, #tpu.memory_space<vmem>>, vector<16x32xf32>,
    } else {
    }
    return
  }
  func.func @transform_0(%arg0: i32, %arg1: i32) -> (i32, i32) {
    %c0_i32 = arith.constant 0 : i32
    %c0_i32_0 = arith.constant 0 : i32
    return %arg0, %c0_i32 : i32, i32
  }
  func.func @transform_1(%arg0: i32, %arg1: i32) -> (i32, i32) {
    %c0_i32 = arith.constant 0 : i32
    %c0_i32_0 = arith.constant 0 : i32
    return %c0_i32, %arg1 : i32, i32
  }
  func.func @transform_2(%arg0: i32, %arg1: i32) -> (i32, i32) {
    %c0_i32 = arith.constant 0 : i32
    %c0_i32_0 = arith.constant 0 : i32
    return %c0_i32, %arg1 : i32, i32
  }
  func.func @transform_3(%arg0: i32, %arg1: i32) -> (i32, i32) {
    %c0_i32 = arith.constant 0 : i32
    %c0_i32_0 = arith.constant 0 : i32
    return %arg1, %c0_i32 : i32, i32
  }
  func.func @transform_4(%arg0: i32, %arg1: i32) -> (i32, i32) {
    %c0_i32 = arith.constant 0 : i32
    %c0_i32_0 = arith.constant 0 : i32
    %c0_i32_1 = arith.constant 0 : i32
    return %c0_i32, %c0_i32_0 : i32, i32
  }
  func.func @transform_5(%arg0: i32, %arg1: i32) -> (i32, i32) {
    %c0_i32 = arith.constant 0 : i32
    %c0_i32_0 = arith.constant 0 : i32
    return %arg0, %c0_i32 : i32, i32
  }
}

</mosaic_0001>

<llo_original>
// kernel: tpu_custom_call.1
$region0: #{tpu_custom_call.1}
  #allocation0 [shape = 'u32[]', space=smem, size = 0x4, offset = 0x4, fixed_abs, tag = 'smem constant byte address 0x4 - core index']
  #allocation1 [shape = 'u32[144,128]{1,0:T(1,128)}', space=vmem, size = 0x12000, scoped, tag = 'internal scratch']
  #allocation2 [shape = 'f32[16,32]{1,0:T(8,128)}', space=vmem, size = 0x2000, scoped, tag = 'scratch operand']
  %s0 = inlined_call_operand.vmem [shape: f32[16,32], index: 0, kind: input, shape index: {}]
  %s1 = inlined_call_operand.vmem [shape: f32[32,64], index: 1, kind: input, shape index: {}]
  %s2 = inlined_call_operand.vmem [shape: f32[1,64], index: 2, kind: input, shape index: {}]
  %s3 = inlined_call_operand.vmem [shape: f32[64,32], index: 3, kind: input, shape index: {}]
  %s4 = inlined_call_operand.vmem [shape: f32[1,32], index: 4, kind: input, shape index: {}]
  %s5 = inlined_call_operand.hbm [shape: f32[16,32], index: 5, kind: output, shape index: {}]
  %s6 = sld [smem:[#allocation0]]
  $region38: #{tpu_custom_call.1} parent=0
    _
  %s8 = ssub.s32 1, %s6
  %s9 = scalar_select 0, %s8, %s6
  $region1: #{tpu_custom_call.1} parent=0
    #allocation3 [shape = 'u8[8192]{0}', space=vmem, size = 0x2000, scoped, tag = 'output window, operand 0, single buffered']
    #allocation4 [shape = 's32[1]{0}', space=sflag, size = 0x4, scoped, tag = 'scoped memory for tpu_custom_call.1']
    %10 = vsyncpa [#allocation4], 0
    // Predicated region
    $region2: #{tpu_custom_call.1} parent=1 // pred_check
      _
    $region3: #{tpu_custom_call.1} parent=1 // pred_check_branch
      %12 = sbr.rel (0) target = $region5
    $region4: #{tpu_custom_call.1} parent=1 // pred_region
      _
    $region5: #{tpu_custom_call.1} parent=1 // pred_fallthru
      _
    // Predicated region
    $region6: #{tpu_custom_call.1} parent=1 // pred_check
      _
    $region7: #{tpu_custom_call.1} parent=1 // pred_check_branch
      %14 = sbr.rel (0) target = $region9
    $region8: #{tpu_custom_call.1} parent=1 // pred_region
      _
    $region9: #{tpu_custom_call.1} parent=1 // pred_fallthru
      _
    // Predicated region
    $region10: #{tpu_custom_call.1} parent=1 // pred_check
      _
    $region11: #{tpu_custom_call.1} parent=1 // pred_check_branch
      %16 = sbr.rel (0) target = $region13
    $region12: #{tpu_custom_call.1} parent=1 // pred_region
      _
    $region13: #{tpu_custom_call.1} parent=1 // pred_fallthru
      _
    // Predicated region
    $region14: #{tpu_custom_call.1} parent=1 // pred_check
      _
    $region15: #{tpu_custom_call.1} parent=1 // pred_check_branch
      %18 = sbr.rel (0) target = $region17
    $region16: #{tpu_custom_call.1} parent=1 // pred_region
      _
    $region17: #{tpu_custom_call.1} parent=1 // pred_fallthru
      _
    // Predicated region
    $region18: #{tpu_custom_call.1} parent=1 // pred_check
      _
    $region19: #{tpu_custom_call.1} parent=1 // pred_check_branch
      %20 = sbr.rel (0) target = $region21
    $region20: #{tpu_custom_call.1} parent=1 // pred_region
      _
    $region21: #{tpu_custom_call.1} parent=1 // pred_fallthru
      _
    %p21 = scmp.eq.s32.totalorder 0, 0
    // Predicated region
    $region22: #{tpu_custom_call.1} parent=1 // pred_check
      %p22 = pneg %p21
    $region23: #{tpu_custom_call.1} parent=1 // pred_check_branch
      %24 = sbr.rel (%p22) target = $region25
    $region24: #{tpu_custom_call.1} parent=1 // pred_region
      %v25 = vld [vmem:[%s4] sm:$0x1]
      %v27 = vlaneseq
      %v28 = vshrl.u32 %v27, 7
      %v29 = vsub.s32 0, %v28
      %v30 = vrot.slane %v25, %v29
      %vm32 = vcmask 261120
      %33 = vst.msk [vmem:[#allocation2] sm:$0xff] %vm32, %v30
      %34 = vst.msk [vmem:[#allocation2 + $0x8] sm:$0xff] %vm32, %v30
    $region25: #{tpu_custom_call.1} parent=1 // pred_fallthru
      _
    %v35 = vld [vmem:[%s0] sm:$0xff]
    %v36 = vld [vmem:[%s0 + $0x8] sm:$0xff]
    %v37 = vld [vmem:[%s1] sm:$0xff]
    %v38 = vld [vmem:[%s1 + $0x8] sm:$0xff]
    %v39 = vld [vmem:[%s1 + $0x10] sm:$0xff]
    %v40 = vld [vmem:[%s1 + $0x18] sm:$0xff]
    %v41 = vld [vmem:[%s2] sm:$0x1]
    %v43 = vlaneseq
    %v44 = vshrl.u32 %v43, 7
    %v45 = vsub.s32 0, %v44
    %v46 = vrot.slane %v41, %v45
    %vm48 = vcmask 261120
    %v50 = vsel %vm48, %v35, 0
    %v53 = vsel %vm48, %v36, 0
    %55 = vmatprep.subr.mxu0 0.0
    %56 = vmatpush1.msra.mxu0 0.0
    %57 = vmatprep.subr.mxu0 0.0
    %58 = vmatpush1.msra.mxu0 0.0
    %59 = vmatprep.subr.mxu0 0.0
    %60 = vmatpush1.msra.mxu0 0.0
    %61 = vmatprep.subr.mxu0 0.0
    %62 = vmatpush1.msra.mxu0 0.0
    %63 = vmatprep.subr.mxu0 0.0
    %64 = vmatpush1.msra.mxu0 0.0
    %65 = vmatprep.subr.mxu0 0.0
    %66 = vmatpush1.msra.mxu0 0.0
    %67 = vmatprep.subr.mxu0 0.0
    %68 = vmatpush1.msra.mxu0 0.0
    %69 = vmatprep.subr.mxu0 0.0
    %70 = vmatpush1.msra.mxu0 0.0
    %71 = vmatprep.subr.mxu0 0.0
    %72 = vmatpush1.msra.mxu0 0.0
    %73 = vmatprep.subr.mxu0 0.0
    %74 = vmatpush1.msra.mxu0 0.0
    %75 = vmatprep.subr.mxu0 0.0
    %76 = vmatpush1.msra.mxu0 0.0
    %77 = vmatprep.subr.mxu0 0.0
    %78 = vmatpush1.msra.mxu0 0.0
    %79 = vmatprep.subr.mxu0 0.0
    %80 = vmatpush1.msra.mxu0 %v40
    %81 = vmatprep.subr.mxu0 0.0
    %82 = vmatpush1.msra.mxu0 %v39
    %83 = vmatprep.subr.mxu0 0.0
    %84 = vmatpush1.msra.mxu0 %v38
    %85 = vmatprep.subr.mxu0 0.0
    %86 = vmatpush1.msra.mxu0 %v37
    %87 = vmatprep.subr.mxu0 0.0
    %88 = vmatpush2.msra.mxu0 0.0
    %89 = vmatprep.subr.mxu0 0.0
    %90 = vmatpush2.msra.mxu0 0.0
    %91 = vmatprep.subr.mxu0 0.0
    %92 = vmatpush2.msra.mxu0 0.0
    %93 = vmatprep.subr.mxu0 0.0
    %94 = vmatpush2.msra.mxu0 0.0
    %95 = vmatprep.subr.mxu0 0.0
    %96 = vmatpush2.msra.mxu0 0.0
    %97 = vmatprep.subr.mxu0 0.0
    %98 = vmatpush2.msra.mxu0 0.0
    %99 = vmatprep.subr.mxu0 0.0
    %100 = vmatpush2.msra.mxu0 0.0
    %101 = vmatprep.subr.mxu0 0.0
    %102 = vmatpush2.msra.mxu0 0.0
    %103 = vmatprep.subr.mxu0 0.0
    %104 = vmatpush2.msra.mxu0 0.0
    %105 = vmatprep.subr.mxu0 0.0
    %106 = vmatpush2.msra.mxu0 0.0
    %107 = vmatprep.subr.mxu0 0.0
    %108 = vmatpush2.msra.mxu0 0.0
    %109 = vmatprep.subr.mxu0 0.0
    %110 = vmatpush2.msra.mxu0 0.0
    %111 = vmatprep.subr.mxu0 0.0
    %112 = vmatpush2.msra.mxu0 0.0
    %113 = vmatprep.subr.mxu0 0.0
    %114 = vmatpush2.msra.mxu0 0.0
    %115 = vmatprep.subr.mxu0 0.0
    %116 = vmatpush2.msra.mxu0 0.0
    %117 = vmatprep.subr.mxu0 0.0
    %118 = vmatpush2.msra.mxu0 0.0
    %119 = vmatprep.mubr.f32.mxu0 0.0
    %120 = vmatmul.mubr.f32.gmra.mxu0 %v50
    %v121 = vpop.f32.mrf.mxu0
    %v122 = vadd.f32 %v46, %v121
    %v123 = vpop.f32.mrf.mxu0
    %124 = vmatprep.mubr.f32.mxu0 0.0
    %125 = vmatmul.mubr.f32.gmra.mxu0 %v53
    %v126 = vpop.f32.mrf.mxu0
    %v127 = vadd.f32 %v46, %v126
    %v128 = vpop.f32.mrf.mxu0
    %129 = vdwg.mxu0
    %v130 = vmax.f32 %v122, 0.0
    %v131 = vmax.f32 %v127, 0.0
    %v132 = vld [vmem:[#allocation2] sm:$0xff]
    %v133 = vld [vmem:[#allocation2 + $0x8] sm:$0xff]
    %v134 = vld [vmem:[%s3] sm:$0xff]
    %v135 = vld [vmem:[%s3 + $0x8] sm:$0xff]
    %v136 = vld [vmem:[%s3 + $0x10] sm:$0xff]
    %v137 = vld [vmem:[%s3 + $0x18] sm:$0xff]
    %v138 = vld [vmem:[%s3 + $0x20] sm:$0xff]
    %v139 = vld [vmem:[%s3 + $0x28] sm:$0xff]
    %v140 = vld [vmem:[%s3 + $0x30] sm:$0xff]
    %v141 = vld [vmem:[%s3 + $0x38] sm:$0xff]
    %vm142 = vcmask 523264
    %v144 = vsel %vm142, %v130, 0
    %v147 = vsel %vm142, %v131, 0
    %149 = vmatprep.subr.mxu0 0.0
    %150 = vmatpush1.msra.mxu0 0.0
    %151 = vmatprep.subr.mxu0 0.0
    %152 = vmatpush1.msra.mxu0 0.0
    %153 = vmatprep.subr.mxu0 0.0
    %154 = vmatpush1.msra.mxu0 0.0
    %155 = vmatprep.subr.mxu0 0.0
    %156 = vmatpush1.msra.mxu0 0.0
    %157 = vmatprep.subr.mxu0 0.0
    %158 = vmatpush1.msra.mxu0 0.0
    %159 = vmatprep.subr.mxu0 0.0
    %160 = vmatpush1.msra.mxu0 0.0
    %161 = vmatprep.subr.mxu0 0.0
    %162 = vmatpush1.msra.mxu0 0.0
    %163 = vmatprep.subr.mxu0 0.0
    %164 = vmatpush1.msra.mxu0 0.0
    %165 = vmatprep.subr.mxu0 0.0
    %166 = vmatpush1.msra.mxu0 %v141
    %167 = vmatprep.subr.mxu0 0.0
    %168 = vmatpush1.msra.mxu0 %v140
    %169 = vmatprep.subr.mxu0 0.0
    %170 = vmatpush1.msra.mxu0 %v139
    %171 = vmatprep.subr.mxu0 0.0
    %172 = vmatpush1.msra.mxu0 %v138
    %173 = vmatprep.subr.mxu0 0.0
    %174 = vmatpush1.msra.mxu0 %v137
    %175 = vmatprep.subr.mxu0 0.0
    %176 = vmatpush1.msra.mxu0 %v136
    %177 = vmatprep.subr.mxu0 0.0
    %178 = vmatpush1.msra.mxu0 %v135
    %179 = vmatprep.subr.mxu0 0.0
    %180 = vmatpush1.msra.mxu0 %v134
    %181 = vmatprep.subr.mxu0 0.0
    %182 = vmatpush2.msra.mxu0 0.0
    %183 = vmatprep.subr.mxu0 0.0
    %184 = vmatpush2.msra.mxu0 0.0
    %185 = vmatprep.subr.mxu0 0.0
    %186 = vmatpush2.msra.mxu0 0.0
    %187 = vmatprep.subr.mxu0 0.0
    %188 = vmatpush2.msra.mxu0 0.0
    %189 = vmatprep.subr.mxu0 0.0
    %190 = vmatpush2.msra.mxu0 0.0
    %191 = vmatprep.subr.mxu0 0.0
    %192 = vmatpush2.msra.mxu0 0.0
    %193 = vmatprep.subr.mxu0 0.0
    %194 = vmatpush2.msra.mxu0 0.0
    %195 = vmatprep.subr.mxu0 0.0
    %196 = vmatpush2.msra.mxu0 0.0
    %197 = vmatprep.subr.mxu0 0.0
    %198 = vmatpush2.msra.mxu0 0.0
    %199 = vmatprep.subr.mxu0 0.0
    %200 = vmatpush2.msra.mxu0 0.0
    %201 = vmatprep.subr.mxu0 0.0
    %202 = vmatpush2.msra.mxu0 0.0
    %203 = vmatprep.subr.mxu0 0.0
    %204 = vmatpush2.msra.mxu0 0.0
    %205 = vmatprep.subr.mxu0 0.0
    %206 = vmatpush2.msra.mxu0 0.0
    %207 = vmatprep.subr.mxu0 0.0
    %208 = vmatpush2.msra.mxu0 0.0
    %209 = vmatprep.subr.mxu0 0.0
    %210 = vmatpush2.msra.mxu0 0.0
    %211 = vmatprep.subr.mxu0 0.0
    %212 = vmatpush2.msra.mxu0 0.0
    %213 = vmatprep.mubr.f32.mxu0 0.0
    %214 = vmatmul.mubr.f32.gmra.mxu0 %v144
    %v215 = vpop.f32.mrf.mxu0
    %v216 = vadd.f32 0.0, %v215
    %v217 = vpop.f32.mrf.mxu0
    %218 = vmatprep.mubr.f32.mxu0 0.0
    %219 = vmatmul.mubr.f32.gmra.mxu0 %v147
    %v220 = vpop.f32.mrf.mxu0
    %v221 = vadd.f32 0.0, %v220
    %v222 = vpop.f32.mrf.mxu0
    %223 = vdwg.mxu0
    %v224 = vadd.f32 %v132, %v216
    %v225 = vadd.f32 %v133, %v221
    %226 = vst.msk [vmem:[#allocation2] sm:$0xff] %vm48, %v224
    %227 = vst.msk [vmem:[#allocation2 + $0x8] sm:$0xff] %vm48, %v225
    // Predicated region
    $region26: #{tpu_custom_call.1} parent=1 // pred_check
      %p228 = pneg %p21
    $region27: #{tpu_custom_call.1} parent=1 // pred_check_branch
      %230 = sbr.rel (%p228) target = $region29
    $region28: #{tpu_custom_call.1} parent=1 // pred_region
      %v231 = vld [vmem:[#allocation2] sm:$0xff]
      %v232 = vld [vmem:[#allocation2 + $0x8] sm:$0xff]
      %233 = vst.msk [vmem:[#allocation3] sm:$0xff] %vm48, %v231
      %234 = vst.msk [vmem:[#allocation3 + $0x8] sm:$0xff] %vm48, %v232
    $region29: #{tpu_custom_call.1} parent=1 // pred_fallthru
      _
    // Predicated region
    $region30: #{tpu_custom_call.1} parent=1 // pred_check
      _
    $region31: #{tpu_custom_call.1} parent=1 // pred_check_branch
      %236 = sbr.rel (0) target = $region33
    $region32: #{tpu_custom_call.1} parent=1 // pred_region
      %s238 = ssub.s32 256, 256
      %239 = vsyncadd [#allocation4], %s238
      %s240 = sshll.u32 [#allocation3], 4
      %s241 = int_to_ptr.vmem [resolvable:$true] %s240
      %246 = dma.vmem_to_hbm [thread:$0]  %s241, 256, %s5, [#allocation4], 128, 128, 8
    $region33: #{tpu_custom_call.1} parent=1 // pred_fallthru
      _
    // Predicated region
    $region34: #{tpu_custom_call.1} parent=1 // pred_check
      _
    $region35: #{tpu_custom_call.1} parent=1 // pred_check_branch
      %248 = sbr.rel (0) target = $region37
    $region36: #{tpu_custom_call.1} parent=1 // pred_region
      %249 = dma.done [#allocation4], 256
    $region37: #{tpu_custom_call.1} parent=1 // pred_fallthru
      _
    %250 = vsyncpa [#allocation4], 1

</llo_original>
